<compile_context>
chip_gen: v5e
topology: v5e:2x2
jax: 0.10.0
libtpu: 0.0.40
codegen_flags: <defaults>
</compile_context>

<pallas_src>
import functools

import jax
import jax.numpy as jnp
from jax.experimental import pallas as pl
from jax.experimental.pallas import tpu as pltpu

_HEADROOM = 2 << 20            # compiler-internal scratch headroom
_MIN_VMEM = 16 << 20
_TARGET_BLOCK_BYTES = 4 << 20  # per-step input block target (amortize step overhead)


def _vmem_capacity_bytes():
    """Best-effort per-core VMEM capacity; conservative (v7x-sized) fallback."""
    try:
        info = pltpu.get_tpu_info()
        cap = getattr(info, "vmem_capacity_bytes", None)
        if cap:
            return int(cap)
    except Exception:
        pass
    return 64 << 20


def _mlp_attention(pooled, w1, w2):
    """sigmoid(fc(max) + fc(avg)) with pooled columns laid out (C, 2*Bt).

    pooled[:, :Bt] are max-pool columns, pooled[:, Bt:] are avg-pool columns.
    Weights stay in torch (out_features, in_features) layout -- no transposes.
    """
    h = jnp.maximum(jnp.dot(w1, pooled, preferred_element_type=jnp.float32), 0.0)
    y = jnp.dot(w2, h, preferred_element_type=jnp.float32)
    n = pooled.shape[-1] // 2
    return jax.nn.sigmoid(y[:, :n] + y[:, n:])          # (C, Bt) float32


# --------------------------------------------------------------------------- #
# Fully fused path: one HBM read + one HBM write of x per batch block.
# --------------------------------------------------------------------------- #
def _fused_kernel(x_ref, w1_ref, w2_ref, o_ref, *, inv_hw):
    # x_ref/o_ref: (Bt, C, HW)   w1_ref: (Cr, C)   w2_ref: (C, Cr)
    bt = x_ref.shape[0]

    # Global pooling per batch element in the natural (C sublane, HW lane)
    # orientation; upcasts live only inside the reductions.
    cols = []
    for b in range(bt):
        cols.append(jnp.max(x_ref[b], axis=-1, keepdims=True).astype(jnp.float32))
    for b in range(bt):
        cols.append(jnp.sum(x_ref[b].astype(jnp.float32), axis=-1, keepdims=True)
                    * inv_hw)
    pooled = jnp.concatenate(cols, axis=-1)              # (C, 2*Bt)

    attn = _mlp_attention(pooled, w1_ref[...], w2_ref[...])   # (C, Bt)

    # Scale: re-read the VMEM input block (no f32 tile kept live) and
    # lane-broadcast the per-channel attention column.
    for b in range(bt):
        a = attn[:, b:b + 1].astype(x_ref.dtype)         # (C, 1)
        o_ref[b] = (x_ref[b] * a).astype(o_ref.dtype)


# --------------------------------------------------------------------------- #
# Two-phase HW-tiled fallback for very large C*HW blocks (VMEM-limited chips).
# --------------------------------------------------------------------------- #
def _pool_kernel(x_ref, w1_ref, w2_ref, attn_ref, max_sc, sum_sc, *,
                 hw, tile_hw, inv_hw):
    # x_ref: (C, tile_hw) (batch dim squeezed); attn_ref: (C, 1) resident per batch.
    t = pl.program_id(1)

    @pl.when(t == 0)
    def _():
        max_sc[...] = jnp.full_like(max_sc, -jnp.inf)
        sum_sc[...] = jnp.zeros_like(sum_sc)

    xb = x_ref[...]
    if hw % tile_hw != 0:
        # Ragged final tile: lanes past the array edge are undefined -> mask with
        # the reduction identities.  Only compiled in when HW is ragged.
        rem = hw - t * tile_hw
        lane = jax.lax.broadcasted_iota(jnp.int32, xb.shape, 1)
        valid = lane < rem
        x_max = jnp.where(valid, xb, -jnp.inf)
        x_sum = jnp.where(valid, xb.astype(jnp.float32), 0.0)
    else:
        x_max = xb
        x_sum = xb.astype(jnp.float32)

    max_sc[...] = jnp.maximum(
        max_sc[...], jnp.max(x_max, axis=-1, keepdims=True).astype(jnp.float32))
    sum_sc[...] = sum_sc[...] + jnp.sum(x_sum, axis=-1, keepdims=True)

    @pl.when(t == pl.num_programs(1) - 1)
    def _():
        pooled = jnp.concatenate([max_sc[...], sum_sc[...] * inv_hw], axis=-1)  # (C, 2)
        attn_ref[...] = _mlp_attention(pooled, w1_ref[...], w2_ref[...])


def _scale_kernel(x_ref, attn_ref, o_ref):
    a = attn_ref[...].astype(x_ref.dtype)                # (C, 1)
    o_ref[...] = (x_ref[...] * a).astype(o_ref.dtype)


# --------------------------------------------------------------------------- #
# Wrapper
# --------------------------------------------------------------------------- #
def channel_attention(x, w1, w2, *, donate_x=False,
                      force_tiled=False, tile_hw_override=None):
    """CBAM ChannelAttention forward.

    x:  (B, C, H, W)
    w1: (C // r, C)  -- torch nn.Linear layout (out_features, in_features), no bias
    w2: (C, C // r)
    """
    B, C, H, W = x.shape
    HW = H * W
    x_r = x.reshape(B, C, HW)          # contiguous reshape: no extra HBM pass
    w1 = w1.astype(jnp.float32)
    w2 = w2.astype(jnp.float32)

    itemsize = jnp.dtype(x.dtype).itemsize
    blk_bytes = C * HW * itemsize
    weight_bytes = w1.size * 4 + w2.size * 4
    usable = int(0.85 * _vmem_capacity_bytes())

    fused_fits = 4 * blk_bytes + 2 * weight_bytes + _HEADROOM <= usable

    if fused_fits and not force_tiled:
        # ---------------- fused single-pass path ----------------
        bt = max(1, min(B, _TARGET_BLOCK_BYTES // max(blk_bytes, 1)))
        while bt > 1 and (B % bt != 0 or
                          4 * bt * blk_bytes + 2 * weight_bytes + _HEADROOM > usable):
            bt -= 1
        needed = 4 * bt * blk_bytes + 2 * weight_bytes + _HEADROOM
        vmem_limit = int(min(usable, max(needed, _MIN_VMEM)))

        out = pl.pallas_call(
            functools.partial(_fused_kernel, inv_hw=1.0 / HW),
            out_shape=jax.ShapeDtypeStruct((B, C, HW), x.dtype),
            grid_spec=pltpu.PrefetchScalarGridSpec(
                num_scalar_prefetch=0,
                grid=(B // bt,),
                in_specs=[
                    pl.BlockSpec((bt, C, HW), lambda i: (i, 0, 0)),
                    pl.BlockSpec(w1.shape, lambda i: (0, 0)),
                    pl.BlockSpec(w2.shape, lambda i: (0, 0)),
                ],
                out_specs=pl.BlockSpec((bt, C, HW), lambda i: (i, 0, 0)),
            ),
            compiler_params=pltpu.CompilerParams(
                dimension_semantics=("parallel",),
                vmem_limit_bytes=vmem_limit,
            ),
            input_output_aliases={0: 0} if donate_x else {},
        )(x_r, w1, w2)
        return out.reshape(B, C, H, W)

    # ---------------- two-phase HW-tiled path ----------------
    if tile_hw_override is not None:
        tile_hw = int(tile_hw_override)
    elif HW <= 128:
        tile_hw = HW
    else:
        cap = max(usable - 2 * weight_bytes - _HEADROOM, 0) // (8 * C * itemsize)
        tile_hw = max(128, min(HW, (cap // 128) * 128))
    num_t = -(-HW // tile_hw)
    # TODO(synk): channels so large that even a 128-lane spatial tile overflows
    # VMEM would additionally need C-tiling; not required at CBAM-typical sizes.

    tile_bytes = C * tile_hw * itemsize
    needed = 4 * tile_bytes + 2 * weight_bytes + 4 * C * 4 + _HEADROOM
    vmem_limit = int(min(usable, max(needed, _MIN_VMEM)))

    # Phase 1: pooled stats + MLP + sigmoid -> per-channel attention (B, C, 1).
    attn = pl.pallas_call(
        functools.partial(_pool_kernel, hw=HW, tile_hw=tile_hw, inv_hw=1.0 / HW),
        out_shape=jax.ShapeDtypeStruct((B, C, 1), jnp.float32),
        grid_spec=pltpu.PrefetchScalarGridSpec(
            num_scalar_prefetch=0,
            grid=(B, num_t),
            in_specs=[
                pl.BlockSpec((None, C, tile_hw), lambda b, t: (b, 0, t)),
                pl.BlockSpec(w1.shape, lambda b, t: (0, 0)),
                pl.BlockSpec(w2.shape, lambda b, t: (0, 0)),
            ],
            out_specs=pl.BlockSpec((None, C, 1), lambda b, t: (b, 0, 0)),
            scratch_shapes=[pltpu.VMEM((C, 1), jnp.float32),
                            pltpu.VMEM((C, 1), jnp.float32)],
        ),
        compiler_params=pltpu.CompilerParams(
            dimension_semantics=("parallel", "arbitrary"),
            vmem_limit_bytes=vmem_limit,
        ),
    )(x_r, w1, w2)

    # Phase 2: scale each HW tile by the per-channel attention.
    out = pl.pallas_call(
        _scale_kernel,
        out_shape=jax.ShapeDtypeStruct((B, C, HW), x.dtype),
        grid_spec=pltpu.PrefetchScalarGridSpec(
            num_scalar_prefetch=0,
            grid=(B, num_t),
            in_specs=[
                pl.BlockSpec((None, C, tile_hw), lambda b, t: (b, 0, t)),
                pl.BlockSpec((None, C, 1), lambda b, t: (b, 0, 0)),
            ],
            out_specs=pl.BlockSpec((None, C, tile_hw), lambda b, t: (b, 0, t)),
        ),
        compiler_params=pltpu.CompilerParams(
            dimension_semantics=("parallel", "parallel"),
            vmem_limit_bytes=vmem_limit,
        ),
    )(x_r, attn)
    return out.reshape(B, C, H, W)


def _reference(x, w1, w2):
    mx = jnp.max(x, axis=(2, 3))
    av = jnp.mean(x, axis=(2, 3))
    fc = lambda v: jnp.maximum(v @ w1.T, 0.0) @ w2.T
    attn = jax.nn.sigmoid(fc(mx) + fc(av))
    return x * attn[:, :, None, None]


if __name__ == "__main__":
    key = jax.random.PRNGKey(0)
    kx1, kx2, kx3, k1, k2 = jax.random.split(key, 5)

    B, C, reduction = 2, 64, 16
    Cr = C // reduction
    # torch nn.Linear layout: (out_features, in_features), bias=False.
    w1 = jax.random.normal(k1, (Cr, C), dtype=jnp.float32) * (1.0 / jnp.sqrt(C))
    w2 = jax.random.normal(k2, (C, Cr), dtype=jnp.float32) * (1.0 / jnp.sqrt(Cr))

    def _check(x, **kwargs):
        y = channel_attention(x, w1, w2, **kwargs)
        jax.block_until_ready(y)
        y_ref = _reference(x, w1, w2)
        assert y.shape == x.shape
        assert jnp.allclose(y, y_ref, atol=2e-5, rtol=2e-5), (
            f"mismatch vs reference for shape {x.shape} kwargs={kwargs}")

    # Fused path, 128-aligned spatial size (HW = 256).
    _check(jax.random.normal(kx1, (B, C, 16, 16), dtype=jnp.float32))
    # Fused path, ragged spatial size (HW = 49): no wrapper pad/slice needed.
    _check(jax.random.normal(kx2, (B, C, 7, 7), dtype=jnp.float32))
    # Two-phase HW-tiled fallback (forced), ragged final tile (HW = 169, tile = 128).
    _check(jax.random.normal(kx3, (B, C, 13, 13), dtype=jnp.float32),
           force_tiled=True, tile_hw_override=128)

    print("KERNEL_OK")
</pallas_src>

<mosaic_0001>
module attributes {stable_mosaic.version = 11 : i64} {
  func.func @_fused_kernel(%arg0: i32, %arg1: memref<2x64x256xf32, #tpu.memory_space<vmem>>, %arg2: memref<4x64xf32, #tpu.memory_space<vmem>>, %arg3: memref<64x4xf32, #tpu.memory_space<vmem>>, %arg4: memref<2x64x256xf32, #tpu.memory_space<vmem>>) attributes {dimension_semantics = [#tpu.dimension_semantics<parallel>], iteration_bounds = array<i64: 1>, scalar_prefetch = 0 : i64, scratch_operands = 0 : i64, tpu.core_type = #tpu.core_type<tc>, window_params = [{transform_indices = @transform_0, window_bounds = array<i64: 2, 64, 256>}, {pipeline_mode = #tpu.pipeline_mode<synchronous>, transform_indices = @transform_1, window_bounds = array<i64: 4, 64>}, {pipeline_mode = #tpu.pipeline_mode<synchronous>, transform_indices = @transform_2, window_bounds = array<i64: 64, 4>}, {transform_indices = @transform_3, window_bounds = array<i64: 2, 64, 256>}]} {
    %c0 = arith.constant 0 : index
    %c0_0 = arith.constant 0 : index
    %c0_1 = arith.constant 0 : index
    %0 = vector.load %arg1[%c0, %c0_0, %c0_1] : memref<2x64x256xf32, #tpu.memory_space<vmem>>, vector<1x64x256xf32>
    %1 = vector.shape_cast %0 : vector<1x64x256xf32> to vector<64x256xf32>
    %cst = arith.constant dense<0xFF800000> : vector<64xf32>
    %2 = vector.multi_reduction <maximumf>, %1, %cst [1] : vector<64x256xf32> to vector<64xf32>
    %3 = vector.shape_cast %2 : vector<64xf32> to vector<64x1xf32>
    %c1 = arith.constant 1 : index
    %c0_2 = arith.constant 0 : index
    %c0_3 = arith.constant 0 : index
    %4 = vector.load %arg1[%c1, %c0_2, %c0_3] : memref<2x64x256xf32, #tpu.memory_space<vmem>>, vector<1x64x256xf32>
    %5 = vector.shape_cast %4 : vector<1x64x256xf32> to vector<64x256xf32>
    %cst_4 = arith.constant dense<0xFF800000> : vector<64xf32>
    %6 = vector.multi_reduction <maximumf>, %5, %cst_4 [1] : vector<64x256xf32> to vector<64xf32>
    %7 = vector.shape_cast %6 : vector<64xf32> to vector<64x1xf32>
    %c0_5 = arith.constant 0 : index
    %c0_6 = arith.constant 0 : index
    %c0_7 = arith.constant 0 : index
    %8 = vector.load %arg1[%c0_5, %c0_6, %c0_7] : memref<2x64x256xf32, #tpu.memory_space<vmem>>, vector<1x64x256xf32>
    %9 = vector.shape_cast %8 : vector<1x64x256xf32> to vector<64x256xf32>
    %cst_8 = arith.constant dense<0.000000e+00> : vector<64xf32>
    %10 = vector.multi_reduction <add>, %9, %cst_8 [1] : vector<64x256xf32> to vector<64xf32>
    %11 = vector.shape_cast %10 : vector<64xf32> to vector<64x1xf32>
    %cst_9 = arith.constant 3.906250e-03 : f32
    %12 = vector.broadcast %cst_9 : f32 to vector<64x1xf32>
    %13 = arith.mulf %11, %12 : vector<64x1xf32>
    %c1_10 = arith.constant 1 : index
    %c0_11 = arith.constant 0 : index
    %c0_12 = arith.constant 0 : index
    %14 = vector.load %arg1[%c1_10, %c0_11, %c0_12] : memref<2x64x256xf32, #tpu.memory_space<vmem>>, vector<1x64x256xf32>
    %15 = vector.shape_cast %14 : vector<1x64x256xf32> to vector<64x256xf32>
    %cst_13 = arith.constant dense<0.000000e+00> : vector<64xf32>
    %16 = vector.multi_reduction <add>, %15, %cst_13 [1] : vector<64x256xf32> to vector<64xf32>
    %17 = vector.shape_cast %16 : vector<64xf32> to vector<64x1xf32>
    %cst_14 = arith.constant 3.906250e-03 : f32
    %18 = vector.broadcast %cst_14 : f32 to vector<64x1xf32>
    %19 = arith.mulf %17, %18 : vector<64x1xf32>
    %20 = tpu.concatenate %3, %7, %13, %19 in 1 : vector<64x1xf32>, vector<64x1xf32>, vector<64x1xf32>, vector<64x1xf32> -> vector<64x4xf32>
    %c0_15 = arith.constant 0 : index
    %c0_16 = arith.constant 0 : index
    %21 = vector.load %arg2[%c0_15, %c0_16] : memref<4x64xf32, #tpu.memory_space<vmem>>, vector<4x64xf32>
    %c0_17 = arith.constant 0 : index
    %c0_18 = arith.constant 0 : index
    %22 = vector.load %arg3[%c0_17, %c0_18] : memref<64x4xf32, #tpu.memory_space<vmem>>, vector<64x4xf32>
    %cst_19 = arith.constant dense<0.000000e+00> : vector<4x4xf32>
    %23 = tpu.matmul %21, %20, %cst_19 {dimension_numbers = #tpu.dot_dimension_numbers<[1], [0], [0], [1], [0, 0, 1, 1], [], []>} : vector<4x64xf32>, vector<64x4xf32>, vector<4x4xf32> -> vector<4x4xf32>
    %cst_20 = arith.constant 0.000000e+00 : f32
    %24 = vector.broadcast %cst_20 : f32 to vector<4x4xf32>
    %25 = arith.maximumf %23, %24 : vector<4x4xf32>
    %cst_21 = arith.constant dense<0.000000e+00> : vector<64x4xf32>
    %26 = tpu.matmul %22, %25, %cst_21 {dimension_numbers = #tpu.dot_dimension_numbers<[1], [0], [0], [1], [0, 0, 1, 1], [], []>} : vector<64x4xf32>, vector<4x4xf32>, vector<64x4xf32> -> vector<64x4xf32>
    %27 = vector.extract_strided_slice %26 {offsets = [0, 0], sizes = [64, 2], strides = [1, 1]} : vector<64x4xf32> to vector<64x2xf32>
    %28 = vector.extract_strided_slice %26 {offsets = [0, 2], sizes = [64, 2], strides = [1, 1]} : vector<64x4xf32> to vector<64x2xf32>
    %29 = arith.addf %27, %28 : vector<64x2xf32>
    %30 = arith.negf %29 : vector<64x2xf32>
    %31 = math.exp %30 : vector<64x2xf32>
    %cst_22 = arith.constant 1.000000e+00 : f32
    %32 = vector.broadcast %cst_22 : f32 to vector<64x2xf32>
    %33 = arith.addf %32, %31 : vector<64x2xf32>
    %34 = arith.divf %32, %33 : vector<64x2xf32>
    %35 = vector.extract_strided_slice %34 {offsets = [0, 0], sizes = [64, 1], strides = [1, 1]} : vector<64x2xf32> to vector<64x1xf32>
    %c0_23 = arith.constant 0 : index
    %c0_24 = arith.constant 0 : index
    %c0_25 = arith.constant 0 : index
    %36 = vector.load %arg1[%c0_23, %c0_24, %c0_25] : memref<2x64x256xf32, #tpu.memory_space<vmem>>, vector<1x64x256xf32>
    %37 = vector.shape_cast %36 : vector<1x64x256xf32> to vector<64x256xf32>
    %38 = vector.broadcast %35 : vector<64x1xf32> to vector<64x256xf32>
    %39 = arith.mulf %37, %38 : vector<64x256xf32>
    %c0_26 = arith.constant 0 : index
    %c0_27 = arith.constant 0 : index
    %c0_28 = arith.constant 0 : index
    %40 = vector.load %arg4[%c0_26, %c0_27, %c0_28] : memref<2x64x256xf32, #tpu.memory_space<vmem>>, vector<1x64x256xf32>
    %41 = vector.shape_cast %40 : vector<1x64x256xf32> to vector<64x256xf32>
    %42 = vector.shape_cast %39 : vector<64x256xf32> to vector<1x64x256xf32>
    tpu.vector_store %arg4[%c0_26, %c0_27, %c0_28], %42 {strides = array<i32>} : memref<2x64x256xf32, #tpu.memory_space<vmem>>, vector<1x64x256xf32>,
    %43 = vector.extract_strided_slice %34 {offsets = [0, 1], sizes = [64, 1], strides = [1, 1]} : vector<64x2xf32> to vector<64x1xf32>
    %c1_29 = arith.constant 1 : index
    %c0_30 = arith.constant 0 : index
    %c0_31 = arith.constant 0 : index
    %44 = vector.load %arg1[%c1_29, %c0_30, %c0_31] : memref<2x64x256xf32, #tpu.memory_space<vmem>>, vector<1x64x256xf32>
    %45 = vector.shape_cast %44 : vector<1x64x256xf32> to vector<64x256xf32>
    %46 = vector.broadcast %43 : vector<64x1xf32> to vector<64x256xf32>
    %47 = arith.mulf %45, %46 : vector<64x256xf32>
    %c1_32 = arith.constant 1 : index
    %c0_33 = arith.constant 0 : index
    %c0_34 = arith.constant 0 : index
    %48 = vector.load %arg4[%c1_32, %c0_33, %c0_34] : memref<2x64x256xf32, #tpu.memory_space<vmem>>, vector<1x64x256xf32>
    %49 = vector.shape_cast %48 : vector<1x64x256xf32> to vector<64x256xf32>
    %50 = vector.shape_cast %47 : vector<64x256xf32> to vector<1x64x256xf32>
    tpu.vector_store %arg4[%c1_32, %c0_33, %c0_34], %50 {strides = array<i32>} : memref<2x64x256xf32, #tpu.memory_space<vmem>>, vector<1x64x256xf32>,
    return
  }
  func.func @transform_0(%arg0: i32) -> (i32, i32, i32) {
    %c0_i32 = arith.constant 0 : i32
    %c0_i32_0 = arith.constant 0 : i32
    %c0_i32_1 = arith.constant 0 : i32
    return %arg0, %c0_i32, %c0_i32_0 : i32, i32, i32
  }
  func.func @transform_1(%arg0: i32) -> (i32, i32) {
    %c0_i32 = arith.constant 0 : i32
    %c0_i32_0 = arith.constant 0 : i32
    %c0_i32_1 = arith.constant 0 : i32
    return %c0_i32, %c0_i32_0 : i32, i32
  }
  func.func @transform_2(%arg0: i32) -> (i32, i32) {
    %c0_i32 = arith.constant 0 : i32
    %c0_i32_0 = arith.constant 0 : i32
    %c0_i32_1 = arith.constant 0 : i32
    return %c0_i32, %c0_i32_0 : i32, i32
  }
  func.func @transform_3(%arg0: i32) -> (i32, i32, i32) {
    %c0_i32 = arith.constant 0 : i32
    %c0_i32_0 = arith.constant 0 : i32
    %c0_i32_1 = arith.constant 0 : i32
    return %arg0, %c0_i32, %c0_i32_0 : i32, i32, i32
  }
}

</mosaic_0001>

<llo_original>
// kernel: tpu_custom_call.1
$region0: #{tpu_custom_call.1}
  #allocation0 [shape = 'u32[]', space=smem, size = 0x4, offset = 0x4, fixed_abs, tag = 'smem constant byte address 0x4 - core index']
  #allocation1 [shape = 'u32[72,128]{1,0:T(1,128)}', space=vmem, size = 0x9000, scoped, tag = 'internal scratch']
  %s0 = inlined_call_operand.hbm [shape: f32[2,64,256], index: 0, kind: input, shape index: {}]
  %s1 = inlined_call_operand.vmem [shape: f32[4,64], index: 1, kind: input, shape index: {}]
  %s2 = inlined_call_operand.vmem [shape: f32[64,4], index: 2, kind: input, shape index: {}]
  %s3 = inlined_call_operand.hbm [shape: f32[2,64,256], index: 3, kind: output, shape index: {}]
  %s4 = sld [smem:[#allocation0]]
  $region26: #{tpu_custom_call.1} parent=0
    _
  %s6 = ssub.s32 1, %s4
  %s7 = scalar_select 0, %s6, %s4
  $region1: #{tpu_custom_call.1} parent=0
    #allocation2 [shape = 'u8[131072]{0}', space=vmem, size = 0x20000, scoped, tag = 'input window, operand 0, single buffered']
    #allocation3 [shape = 's32[1]{0}', space=sflag, size = 0x4, scoped, tag = 'scoped memory for tpu_custom_call.1']
    #allocation4 [shape = 's32[1]{0}', space=sflag, size = 0x4, scoped, tag = 'scoped memory for tpu_custom_call.1']
    #allocation5 [shape = 'u8[131072]{0}', space=vmem, size = 0x20000, scoped, tag = 'output window, operand 0, single buffered']
    %8 = vsyncpa [#allocation3], 0
    %9 = vsyncpa [#allocation4], 0
    // Predicated region
    $region2: #{tpu_custom_call.1} parent=1 // pred_check
      _
    $region3: #{tpu_custom_call.1} parent=1 // pred_check_branch
      %11 = sbr.rel (0) target = $region5
    $region4: #{tpu_custom_call.1} parent=1 // pred_region
      %13 = vsyncadd [#allocation3], 0
      %s14 = sshll.u32 %s0, 4
      %s15 = int_to_ptr.hbm [resolvable:$true] %s14
      %s16 = sshll.u32 [#allocation2], 4
      %s17 = int_to_ptr.vmem [resolvable:$true] %s16
      %22 = dma.hbm_to_vmem [thread:$0]  %s15, 4096, %s17, [#allocation3], 256, 256, 16
    $region5: #{tpu_custom_call.1} parent=1 // pred_fallthru
      _
    // Predicated region
    $region6: #{tpu_custom_call.1} parent=1 // pred_check
      _
    $region7: #{tpu_custom_call.1} parent=1 // pred_check_branch
      %24 = sbr.rel (0) target = $region9
    $region8: #{tpu_custom_call.1} parent=1 // pred_region
      _
    $region9: #{tpu_custom_call.1} parent=1 // pred_fallthru
      _
    // Predicated region
    $region10: #{tpu_custom_call.1} parent=1 // pred_check
      _
    $region11: #{tpu_custom_call.1} parent=1 // pred_check_branch
      %26 = sbr.rel (0) target = $region13
    $region12: #{tpu_custom_call.1} parent=1 // pred_region
      _
    $region13: #{tpu_custom_call.1} parent=1 // pred_fallthru
      _
    // Predicated region
    $region14: #{tpu_custom_call.1} parent=1 // pred_check
      _
    $region15: #{tpu_custom_call.1} parent=1 // pred_check_branch
      %28 = sbr.rel (0) target = $region17
    $region16: #{tpu_custom_call.1} parent=1 // pred_region
      %30 = dma.done [#allocation3], 4096
    $region17: #{tpu_custom_call.1} parent=1 // pred_fallthru
      _
    %v31 = vld [vmem:[#allocation2] sm:$0xff]
    %v32 = vld [vmem:[#allocation2 + $0x8] sm:$0xff]
    %v33 = vld [vmem:[#allocation2 + $0x10] sm:$0xff]
    %v34 = vld [vmem:[#allocation2 + $0x18] sm:$0xff]
    %v35 = vld [vmem:[#allocation2 + $0x20] sm:$0xff]
    %v36 = vld [vmem:[#allocation2 + $0x28] sm:$0xff]
    %v37 = vld [vmem:[#allocation2 + $0x30] sm:$0xff]
    %v38 = vld [vmem:[#allocation2 + $0x38] sm:$0xff]
    %v39 = vld [vmem:[#allocation2 + $0x40] sm:$0xff]
    %v40 = vld [vmem:[#allocation2 + $0x48] sm:$0xff]
    %v41 = vld [vmem:[#allocation2 + $0x50] sm:$0xff]
    %v42 = vld [vmem:[#allocation2 + $0x58] sm:$0xff]
    %v43 = vld [vmem:[#allocation2 + $0x60] sm:$0xff]
    %v44 = vld [vmem:[#allocation2 + $0x68] sm:$0xff]
    %v45 = vld [vmem:[#allocation2 + $0x70] sm:$0xff]
    %v46 = vld [vmem:[#allocation2 + $0x78] sm:$0xff]
    %v47 = vmax.f32 %v31, %v32
    %48 = vmax.xlane.f32.xlu0 %v47
    %v49 = vpop.xlane.xlu0 %48
    %v50 = vmax.f32 %v33, %v34
    %51 = vmax.xlane.f32.xlu0 %v50
    %v52 = vpop.xlane.xlu0 %51
    %v53 = vmax.f32 %v35, %v36
    %54 = vmax.xlane.f32.xlu0 %v53
    %v55 = vpop.xlane.xlu0 %54
    %v56 = vmax.f32 %v37, %v38
    %57 = vmax.xlane.f32.xlu0 %v56
    %v58 = vpop.xlane.xlu0 %57
    %v59 = vmax.f32 %v39, %v40
    %60 = vmax.xlane.f32.xlu0 %v59
    %v61 = vpop.xlane.xlu0 %60
    %v62 = vmax.f32 %v41, %v42
    %63 = vmax.xlane.f32.xlu0 %v62
    %v64 = vpop.xlane.xlu0 %63
    %v65 = vmax.f32 %v43, %v44
    %66 = vmax.xlane.f32.xlu0 %v65
    %v67 = vpop.xlane.xlu0 %66
    %v68 = vmax.f32 %v45, %v46
    %69 = vmax.xlane.f32.xlu0 %v68
    %v70 = vpop.xlane.xlu0 %69
    %s71 = scalar_lea.vmem [#allocation2], 128
    %v72 = vld [vmem:[%s71] sm:$0xff]
    %v73 = vld [vmem:[%s71 + $0x8] sm:$0xff]
    %v74 = vld [vmem:[%s71 + $0x10] sm:$0xff]
    %v75 = vld [vmem:[%s71 + $0x18] sm:$0xff]
    %v76 = vld [vmem:[%s71 + $0x20] sm:$0xff]
    %v77 = vld [vmem:[%s71 + $0x28] sm:$0xff]
    %v78 = vld [vmem:[%s71 + $0x30] sm:$0xff]
    %v79 = vld [vmem:[%s71 + $0x38] sm:$0xff]
    %v80 = vld [vmem:[%s71 + $0x40] sm:$0xff]
    %v81 = vld [vmem:[%s71 + $0x48] sm:$0xff]
    %v82 = vld [vmem:[%s71 + $0x50] sm:$0xff]
    %v83 = vld [vmem:[%s71 + $0x58] sm:$0xff]
    %v84 = vld [vmem:[%s71 + $0x60] sm:$0xff]
    %v85 = vld [vmem:[%s71 + $0x68] sm:$0xff]
    %v86 = vld [vmem:[%s71 + $0x70] sm:$0xff]
    %v87 = vld [vmem:[%s71 + $0x78] sm:$0xff]
    %v88 = vmax.f32 %v72, %v73
    %89 = vmax.xlane.f32.xlu0 %v88
    %v90 = vpop.xlane.xlu0 %89
    %v91 = vmax.f32 %v74, %v75
    %92 = vmax.xlane.f32.xlu0 %v91
    %v93 = vpop.xlane.xlu0 %92
    %v94 = vmax.f32 %v76, %v77
    %95 = vmax.xlane.f32.xlu0 %v94
    %v96 = vpop.xlane.xlu0 %95
    %v97 = vmax.f32 %v78, %v79
    %98 = vmax.xlane.f32.xlu0 %v97
    %v99 = vpop.xlane.xlu0 %98
    %v100 = vmax.f32 %v80, %v81
    %101 = vmax.xlane.f32.xlu0 %v100
    %v102 = vpop.xlane.xlu0 %101
    %v103 = vmax.f32 %v82, %v83
    %104 = vmax.xlane.f32.xlu0 %v103
    %v105 = vpop.xlane.xlu0 %104
    %v106 = vmax.f32 %v84, %v85
    %107 = vmax.xlane.f32.xlu0 %v106
    %v108 = vpop.xlane.xlu0 %107
    %v109 = vmax.f32 %v86, %v87
    %110 = vmax.xlane.f32.xlu0 %v109
    %v111 = vpop.xlane.xlu0 %110
    %v112 = vadd.f32 %v31, %v32
    %113 = vadd.xlane.f32.xlu0 %v112
    %v114 = vpop.xlane.xlu0 %113
    %v115 = vadd.f32 %v33, %v34
    %116 = vadd.xlane.f32.xlu0 %v115
    %v117 = vpop.xlane.xlu0 %116
    %v118 = vadd.f32 %v35, %v36
    %119 = vadd.xlane.f32.xlu0 %v118
    %v120 = vpop.xlane.xlu0 %119
    %v121 = vadd.f32 %v37, %v38
    %122 = vadd.xlane.f32.xlu0 %v121
    %v123 = vpop.xlane.xlu0 %122
    %v124 = vadd.f32 %v39, %v40
    %125 = vadd.xlane.f32.xlu0 %v124
    %v126 = vpop.xlane.xlu0 %125
    %v127 = vadd.f32 %v41, %v42
    %128 = vadd.xlane.f32.xlu0 %v127
    %v129 = vpop.xlane.xlu0 %128
    %v130 = vadd.f32 %v43, %v44
    %131 = vadd.xlane.f32.xlu0 %v130
    %v132 = vpop.xlane.xlu0 %131
    %v133 = vadd.f32 %v45, %v46
    %134 = vadd.xlane.f32.xlu0 %v133
    %v135 = vpop.xlane.xlu0 %134
    %v136 = vmul.f32 %v114, 0.00390625
    %v137 = vmul.f32 %v117, 0.00390625
    %v138 = vmul.f32 %v120, 0.00390625
    %v139 = vmul.f32 %v123, 0.00390625
    %v140 = vmul.f32 %v126, 0.00390625
    %v141 = vmul.f32 %v129, 0.00390625
    %v142 = vmul.f32 %v132, 0.00390625
    %v143 = vmul.f32 %v135, 0.00390625
    %v144 = vadd.f32 %v72, %v73
    %145 = vadd.xlane.f32.xlu0 %v144
    %v146 = vpop.xlane.xlu0 %145
    %v147 = vadd.f32 %v74, %v75
    %148 = vadd.xlane.f32.xlu0 %v147
    %v149 = vpop.xlane.xlu0 %148
    %v150 = vadd.f32 %v76, %v77
    %151 = vadd.xlane.f32.xlu0 %v150
    %v152 = vpop.xlane.xlu0 %151
    %v153 = vadd.f32 %v78, %v79
    %154 = vadd.xlane.f32.xlu0 %v153
    %v155 = vpop.xlane.xlu0 %154
    %v156 = vadd.f32 %v80, %v81
    %157 = vadd.xlane.f32.xlu0 %v156
    %v158 = vpop.xlane.xlu0 %157
    %v159 = vadd.f32 %v82, %v83
    %160 = vadd.xlane.f32.xlu0 %v159
    %v161 = vpop.xlane.xlu0 %160
    %v162 = vadd.f32 %v84, %v85
    %163 = vadd.xlane.f32.xlu0 %v162
    %v164 = vpop.xlane.xlu0 %163
    %v165 = vadd.f32 %v86, %v87
    %166 = vadd.xlane.f32.xlu0 %v165
    %v167 = vpop.xlane.xlu0 %166
    %v168 = vmul.f32 %v146, 0.00390625
    %v169 = vmul.f32 %v149, 0.00390625
    %v170 = vmul.f32 %v152, 0.00390625
    %v171 = vmul.f32 %v155, 0.00390625
    %v172 = vmul.f32 %v158, 0.00390625
    %v173 = vmul.f32 %v161, 0.00390625
    %v174 = vmul.f32 %v164, 0.00390625
    %v175 = vmul.f32 %v167, 0.00390625
    %vm176 = vcmask 7168
    %v177 = vsel %vm176, %v49, %v90
    %v178 = vsel %vm176, %v52, %v93
    %v179 = vsel %vm176, %v55, %v96
    %v180 = vsel %vm176, %v58, %v99
    %v181 = vsel %vm176, %v61, %v102
    %v182 = vsel %vm176, %v64, %v105
    %v183 = vsel %vm176, %v67, %v108
    %v184 = vsel %vm176, %v70, %v111
    %vm185 = vcmask 15360
    %v186 = vsel %vm185, %v177, %v136
    %v187 = vsel %vm185, %v178, %v137
    %v188 = vsel %vm185, %v179, %v138
    %v189 = vsel %vm185, %v180, %v139
    %v190 = vsel %vm185, %v181, %v140
    %v191 = vsel %vm185, %v182, %v141
    %v192 = vsel %vm185, %v183, %v142
    %v193 = vsel %vm185, %v184, %v143
    %vm194 = vcmask 23552
    %v195 = vsel %vm194, %v186, %v168
    %v196 = vsel %vm194, %v187, %v169
    %v197 = vsel %vm194, %v188, %v170
    %v198 = vsel %vm194, %v189, %v171
    %v199 = vsel %vm194, %v190, %v172
    %v200 = vsel %vm194, %v191, %v173
    %v201 = vsel %vm194, %v192, %v174
    %v202 = vsel %vm194, %v193, %v175
    %v203 = vld [vmem:[%s1] sm:$0xf]
    %v204 = vld [vmem:[%s2] sm:$0xff]
    %v205 = vld [vmem:[%s2 + $0x8] sm:$0xff]
    %v206 = vld [vmem:[%s2 + $0x10] sm:$0xff]
    %v207 = vld [vmem:[%s2 + $0x18] sm:$0xff]
    %v208 = vld [vmem:[%s2 + $0x20] sm:$0xff]
    %v209 = vld [vmem:[%s2 + $0x28] sm:$0xff]
    %v210 = vld [vmem:[%s2 + $0x30] sm:$0xff]
    %v211 = vld [vmem:[%s2 + $0x38] sm:$0xff]
    %vm212 = vcmask 523264
    %v214 = vsel %vm212, %v203, 0
    %216 = vmatpush.msra.mxu0 0.0
    %217 = vmatpush.msra.mxu0 0.0
    %218 = vmatpush.msra.mxu0 0.0
    %219 = vmatpush.msra.mxu0 0.0
    %220 = vmatpush.msra.mxu0 0.0
    %221 = vmatpush.msra.mxu0 0.0
    %222 = vmatpush.msra.mxu0 0.0
    %223 = vmatpush.msra.mxu0 0.0
    %224 = vmatpush.msra.mxu0 %v202
    %225 = vmatpush.msra.mxu0 %v201
    %226 = vmatpush.msra.mxu0 %v200
    %227 = vmatpush.msra.mxu0 %v199
    %228 = vmatpush.msra.mxu0 %v198
    %229 = vmatpush.msra.mxu0 %v197
    %230 = vmatpush.msra.mxu0 %v196
    %231 = vmatpush.msra.mxu0 %v195
    %232 = vmatmul.f32.gmra.mxu0 %v214
    %v233 = vpop.f32.mrf.mxu0
    %v234 = vadd.f32 0.0, %v233
    %235 = vdwg.mxu0
    %v236 = vmax.f32 %v234, 0.0
    %vm237 = vcmask 31744
    %v239 = vsel %vm237, %v204, 0
    %v242 = vsel %vm237, %v205, 0
    %v245 = vsel %vm237, %v206, 0
    %v248 = vsel %vm237, %v207, 0
    %v251 = vsel %vm237, %v208, 0
    %v254 = vsel %vm237, %v209, 0
    %v257 = vsel %vm237, %v210, 0
    %v260 = vsel %vm237, %v211, 0
    %vm262 = vcmask 1043456
    %v264 = vsel %vm262, %v236, 0
    %266 = vmatpush.msra.mxu0 0.0
    %267 = vmatpush.msra.mxu0 0.0
    %268 = vmatpush.msra.mxu0 0.0
    %269 = vmatpush.msra.mxu0 0.0
    %270 = vmatpush.msra.mxu0 0.0
    %271 = vmatpush.msra.mxu0 0.0
    %272 = vmatpush.msra.mxu0 0.0
    %273 = vmatpush.msra.mxu0 0.0
    %274 = vmatpush.msra.mxu0 0.0
    %275 = vmatpush.msra.mxu0 0.0
    %276 = vmatpush.msra.mxu0 0.0
    %277 = vmatpush.msra.mxu0 0.0
    %278 = vmatpush.msra.mxu0 0.0
    %279 = vmatpush.msra.mxu0 0.0
    %280 = vmatpush.msra.mxu0 0.0
    %281 = vmatpush.msra.mxu0 %v264
    %282 = vmatmul.f32.gmra.mxu0 %v239
    %v283 = vpop.f32.mrf.mxu0
    %v284 = vadd.f32 0.0, %v283
    %285 = vmatmul.f32.gmra.mxu0 %v242
    %v286 = vpop.f32.mrf.mxu0
    %v287 = vadd.f32 0.0, %v286
    %288 = vmatmul.f32.gmra.mxu0 %v245
    %v289 = vpop.f32.mrf.mxu0
    %v290 = vadd.f32 0.0, %v289
    %291 = vmatmul.f32.gmra.mxu0 %v248
    %v292 = vpop.f32.mrf.mxu0
    %v293 = vadd.f32 0.0, %v292
    %294 = vmatmul.f32.gmra.mxu0 %v251
    %v295 = vpop.f32.mrf.mxu0
    %v296 = vadd.f32 0.0, %v295
    %297 = vmatmul.f32.gmra.mxu0 %v254
    %v298 = vpop.f32.mrf.mxu0
    %v299 = vadd.f32 0.0, %v298
    %300 = vmatmul.f32.gmra.mxu0 %v257
    %v301 = vpop.f32.mrf.mxu0
    %v302 = vadd.f32 0.0, %v301
    %303 = vmatmul.f32.gmra.mxu0 %v260
    %v304 = vpop.f32.mrf.mxu0
    %v305 = vadd.f32 0.0, %v304
    %306 = vdwg.mxu0
    %315 = vrot.lane.b32.xlu0 %v284, 126
    %v316 = vpop.permute.xlu0 %315
    %317 = vrot.lane.b32.xlu0 %v287, 126
    %v318 = vpop.permute.xlu0 %317
    %319 = vrot.lane.b32.xlu0 %v290, 126
    %v320 = vpop.permute.xlu0 %319
    %321 = vrot.lane.b32.xlu0 %v293, 126
    %v322 = vpop.permute.xlu0 %321
    %323 = vrot.lane.b32.xlu0 %v296, 126
    %v324 = vpop.permute.xlu0 %323
    %325 = vrot.lane.b32.xlu0 %v299, 126
    %v326 = vpop.permute.xlu0 %325
    %327 = vrot.lane.b32.xlu0 %v302, 126
    %v328 = vpop.permute.xlu0 %327
    %329 = vrot.lane.b32.xlu0 %v305, 126
    %v330 = vpop.permute.xlu0 %329
    %v339 = vadd.f32 %v284, %v316
    %v340 = vadd.f32 %v287, %v318
    %v341 = vadd.f32 %v290, %v320
    %v342 = vadd.f32 %v293, %v322
    %v343 = vadd.f32 %v296, %v324
    %v344 = vadd.f32 %v299, %v326
    %v345 = vadd.f32 %v302, %v328
    %v346 = vadd.f32 %v305, %v330
    %v347 = vxor.u32 %v339, 2147483648
    %v348 = vxor.u32 %v340, 2147483648
    %v349 = vxor.u32 %v341, 2147483648
    %v350 = vxor.u32 %v342, 2147483648
    %v351 = vxor.u32 %v343, 2147483648
    %v352 = vxor.u32 %v344, 2147483648
    %v353 = vxor.u32 %v345, 2147483648
    %v354 = vxor.u32 %v346, 2147483648
    %v355 = vmul.f32 %v347, 1.442695
    %v356 = vpow.pop %v355
    %v357 = vmul.f32 %v348, 1.442695
    %v358 = vpow.pop %v357
    %v359 = vmul.f32 %v349, 1.442695
    %v360 = vpow.pop %v359
    %v361 = vmul.f32 %v350, 1.442695
    %v362 = vpow.pop %v361
    %v363 = vmul.f32 %v351, 1.442695
    %v364 = vpow.pop %v363
    %v365 = vmul.f32 %v352, 1.442695
    %v366 = vpow.pop %v365
    %v367 = vmul.f32 %v353, 1.442695
    %v368 = vpow.pop %v367
    %v369 = vmul.f32 %v354, 1.442695
    %v370 = vpow.pop %v369
    %v371 = vadd.f32 %v356, 1.0
    %v372 = vadd.f32 %v358, 1.0
    %v373 = vadd.f32 %v360, 1.0
    %v374 = vadd.f32 %v362, 1.0
    %v375 = vadd.f32 %v364, 1.0
    %v376 = vadd.f32 %v366, 1.0
    %v377 = vadd.f32 %v368, 1.0
    %v378 = vadd.f32 %v370, 1.0
    %v379 = vrcp.pop %v371
    %v380 = vmul.f32 %v371, %v379
    %v381 = vsub.f32 1.0, %v380
    %v382 = vmul.f32 %v379, %v381
    %v383 = vadd.f32 %v379, %v382
    %vm384 = vweird.f32 %v371
    %vm385 = vweird.f32 %v379
    %vm386 = vmor %vm384, %vm385
    %v387 = vsel %vm386, %v379, %v383
    %v388 = vand.u32 2147483647, %v371
    %vm389 = vcmp.eq.f32.partialorder %v388, 8.507059e+37
    %v390 = vand.u32 %v371, 2147483648
    %v391 = vor.u32 1.1754944e-38, %v390
    %v392 = vsel %vm389, %v391, %v387
    %v393 = vmul.f32 1.0, %v392
    %v394 = vrcp.pop %v372
    %v395 = vmul.f32 %v372, %v394
    %v396 = vsub.f32 1.0, %v395
    %v397 = vmul.f32 %v394, %v396
    %v398 = vadd.f32 %v394, %v397
    %vm399 = vweird.f32 %v372
    %vm400 = vweird.f32 %v394
    %vm401 = vmor %vm399, %vm400
    %v402 = vsel %vm401, %v394, %v398
    %v403 = vand.u32 2147483647, %v372
    %vm404 = vcmp.eq.f32.partialorder %v403, 8.507059e+37
    %v405 = vand.u32 %v372, 2147483648
    %v406 = vor.u32 1.1754944e-38, %v405
    %v407 = vsel %vm404, %v406, %v402
    %v408 = vmul.f32 1.0, %v407
    %v409 = vrcp.pop %v373
    %v410 = vmul.f32 %v373, %v409
    %v411 = vsub.f32 1.0, %v410
    %v412 = vmul.f32 %v409, %v411
    %v413 = vadd.f32 %v409, %v412
    %vm414 = vweird.f32 %v373
    %vm415 = vweird.f32 %v409
    %vm416 = vmor %vm414, %vm415
    %v417 = vsel %vm416, %v409, %v413
    %v418 = vand.u32 2147483647, %v373
    %vm419 = vcmp.eq.f32.partialorder %v418, 8.507059e+37
    %v420 = vand.u32 %v373, 2147483648
    %v421 = vor.u32 1.1754944e-38, %v420
    %v422 = vsel %vm419, %v421, %v417
    %v423 = vmul.f32 1.0, %v422
    %v424 = vrcp.pop %v374
    %v425 = vmul.f32 %v374, %v424
    %v426 = vsub.f32 1.0, %v425
    %v427 = vmul.f32 %v424, %v426
    %v428 = vadd.f32 %v424, %v427
    %vm429 = vweird.f32 %v374
    %vm430 = vweird.f32 %v424
    %vm431 = vmor %vm429, %vm430
    %v432 = vsel %vm431, %v424, %v428
    %v433 = vand.u32 2147483647, %v374
    %vm434 = vcmp.eq.f32.partialorder %v433, 8.507059e+37
    %v435 = vand.u32 %v374, 2147483648
    %v436 = vor.u32 1.1754944e-38, %v435
    %v437 = vsel %vm434, %v436, %v432
    %v438 = vmul.f32 1.0, %v437
    %v439 = vrcp.pop %v375
    %v440 = vmul.f32 %v375, %v439
    %v441 = vsub.f32 1.0, %v440
    %v442 = vmul.f32 %v439, %v441
    %v443 = vadd.f32 %v439, %v442
    %vm444 = vweird.f32 %v375
    %vm445 = vweird.f32 %v439
    %vm446 = vmor %vm444, %vm445
    %v447 = vsel %vm446, %v439, %v443
    %v448 = vand.u32 2147483647, %v375
    %vm449 = vcmp.eq.f32.partialorder %v448, 8.507059e+37
    %v450 = vand.u32 %v375, 2147483648
    %v451 = vor.u32 1.1754944e-38, %v450
    %v452 = vsel %vm449, %v451, %v447
    %v453 = vmul.f32 1.0, %v452
    %v454 = vrcp.pop %v376
    %v455 = vmul.f32 %v376, %v454
    %v456 = vsub.f32 1.0, %v455
    %v457 = vmul.f32 %v454, %v456
    %v458 = vadd.f32 %v454, %v457
    %vm459 = vweird.f32 %v376
    %vm460 = vweird.f32 %v454
    %vm461 = vmor %vm459, %vm460
    %v462 = vsel %vm461, %v454, %v458
    %v463 = vand.u32 2147483647, %v376
    %vm464 = vcmp.eq.f32.partialorder %v463, 8.507059e+37
    %v465 = vand.u32 %v376, 2147483648
    %v466 = vor.u32 1.1754944e-38, %v465
    %v467 = vsel %vm464, %v466, %v462
    %v468 = vmul.f32 1.0, %v467
    %v469 = vrcp.pop %v377
    %v470 = vmul.f32 %v377, %v469
    %v471 = vsub.f32 1.0, %v470
    %v472 = vmul.f32 %v469, %v471
    %v473 = vadd.f32 %v469, %v472
    %vm474 = vweird.f32 %v377
    %vm475 = vweird.f32 %v469
    %vm476 = vmor %vm474, %vm475
    %v477 = vsel %vm476, %v469, %v473
    %v478 = vand.u32 2147483647, %v377
    %vm479 = vcmp.eq.f32.partialorder %v478, 8.507059e+37
    %v480 = vand.u32 %v377, 2147483648
    %v481 = vor.u32 1.1754944e-38, %v480
    %v482 = vsel %vm479, %v481, %v477
    %v483 = vmul.f32 1.0, %v482
    %v484 = vrcp.pop %v378
    %v485 = vmul.f32 %v378, %v484
    %v486 = vsub.f32 1.0, %v485
    %v487 = vmul.f32 %v484, %v486
    %v488 = vadd.f32 %v484, %v487
    %vm489 = vweird.f32 %v378
    %vm490 = vweird.f32 %v484
    %vm491 = vmor %vm489, %vm490
    %v492 = vsel %vm491, %v484, %v488
    %v493 = vand.u32 2147483647, %v378
    %vm494 = vcmp.eq.f32.partialorder %v493, 8.507059e+37
    %v495 = vand.u32 %v378, 2147483648
    %v496 = vor.u32 1.1754944e-38, %v495
    %v497 = vsel %vm494, %v496, %v492
    %v498 = vmul.f32 1.0, %v497
    %500 = vset.pattern.permute.xlu0 0
    %501 = vperm.xlu0 %500, %v393
    %v502 = vpop.permute.xlu0 %501
    %505 = vset.pattern.permute.xlu0 0
    %506 = vperm.xlu0 %505, %v408
    %v507 = vpop.permute.xlu0 %506
    %510 = vset.pattern.permute.xlu0 0
    %511 = vperm.xlu0 %510, %v423
    %v512 = vpop.permute.xlu0 %511
    %515 = vset.pattern.permute.xlu0 0
    %516 = vperm.xlu0 %515, %v438
    %v517 = vpop.permute.xlu0 %516
    %520 = vset.pattern.permute.xlu0 0
    %521 = vperm.xlu0 %520, %v453
    %v522 = vpop.permute.xlu0 %521
    %525 = vset.pattern.permute.xlu0 0
    %526 = vperm.xlu0 %525, %v468
    %v527 = vpop.permute.xlu0 %526
    %530 = vset.pattern.permute.xlu0 0
    %531 = vperm.xlu0 %530, %v483
    %v532 = vpop.permute.xlu0 %531
    %535 = vset.pattern.permute.xlu0 0
    %536 = vperm.xlu0 %535, %v498
    %v537 = vpop.permute.xlu0 %536
    %v539 = vmul.f32 %v31, %v502
    %v540 = vmul.f32 %v32, %v502
    %v541 = vmul.f32 %v33, %v507
    %v542 = vmul.f32 %v34, %v507
    %v543 = vmul.f32 %v35, %v512
    %v544 = vmul.f32 %v36, %v512
    %v545 = vmul.f32 %v37, %v517
    %v546 = vmul.f32 %v38, %v517
    %v547 = vmul.f32 %v39, %v522
    %v548 = vmul.f32 %v40, %v522
    %v549 = vmul.f32 %v41, %v527
    %v550 = vmul.f32 %v42, %v527
    %v551 = vmul.f32 %v43, %v532
    %v552 = vmul.f32 %v44, %v532
    %v553 = vmul.f32 %v45, %v537
    %v554 = vmul.f32 %v46, %v537
    %555 = vst [vmem:[#allocation5] sm:$0xff] %v539
    %556 = vst [vmem:[#allocation5 + $0x8] sm:$0xff] %v540
    %557 = vst [vmem:[#allocation5 + $0x10] sm:$0xff] %v541
    %558 = vst [vmem:[#allocation5 + $0x18] sm:$0xff] %v542
    %559 = vst [vmem:[#allocation5 + $0x20] sm:$0xff] %v543
    %560 = vst [vmem:[#allocation5 + $0x28] sm:$0xff] %v544
    %561 = vst [vmem:[#allocation5 + $0x30] sm:$0xff] %v545
    %562 = vst [vmem:[#allocation5 + $0x38] sm:$0xff] %v546
    %563 = vst [vmem:[#allocation5 + $0x40] sm:$0xff] %v547
    %564 = vst [vmem:[#allocation5 + $0x48] sm:$0xff] %v548
    %565 = vst [vmem:[#allocation5 + $0x50] sm:$0xff] %v549
    %566 = vst [vmem:[#allocation5 + $0x58] sm:$0xff] %v550
    %567 = vst [vmem:[#allocation5 + $0x60] sm:$0xff] %v551
    %568 = vst [vmem:[#allocation5 + $0x68] sm:$0xff] %v552
    %569 = vst [vmem:[#allocation5 + $0x70] sm:$0xff] %v553
    %570 = vst [vmem:[#allocation5 + $0x78] sm:$0xff] %v554
    %v571 = vld [vmem:[%s71] sm:$0xff]
    %v572 = vld [vmem:[%s71 + $0x8] sm:$0xff]
    %v573 = vld [vmem:[%s71 + $0x10] sm:$0xff]
    %v574 = vld [vmem:[%s71 + $0x18] sm:$0xff]
    %v575 = vld [vmem:[%s71 + $0x20] sm:$0xff]
    %v576 = vld [vmem:[%s71 + $0x28] sm:$0xff]
    %v577 = vld [vmem:[%s71 + $0x30] sm:$0xff]
    %v578 = vld [vmem:[%s71 + $0x38] sm:$0xff]
    %v579 = vld [vmem:[%s71 + $0x40] sm:$0xff]
    %v580 = vld [vmem:[%s71 + $0x48] sm:$0xff]
    %v581 = vld [vmem:[%s71 + $0x50] sm:$0xff]
    %v582 = vld [vmem:[%s71 + $0x58] sm:$0xff]
    %v583 = vld [vmem:[%s71 + $0x60] sm:$0xff]
    %v584 = vld [vmem:[%s71 + $0x68] sm:$0xff]
    %v585 = vld [vmem:[%s71 + $0x70] sm:$0xff]
    %v586 = vld [vmem:[%s71 + $0x78] sm:$0xff]
    %587 = vset.pattern.permute.xlu0 1
    %588 = vperm.xlu0 %587, %v393
    %v589 = vpop.permute.xlu0 %588
    %591 = vset.pattern.permute.xlu0 1
    %592 = vperm.xlu0 %591, %v408
    %v593 = vpop.permute.xlu0 %592
    %595 = vset.pattern.permute.xlu0 1
    %596 = vperm.xlu0 %595, %v423
    %v597 = vpop.permute.xlu0 %596
    %599 = vset.pattern.permute.xlu0 1
    %600 = vperm.xlu0 %599, %v438
    %v601 = vpop.permute.xlu0 %600
    %603 = vset.pattern.permute.xlu0 1
    %604 = vperm.xlu0 %603, %v453
    %v605 = vpop.permute.xlu0 %604
    %607 = vset.pattern.permute.xlu0 1
    %608 = vperm.xlu0 %607, %v468
    %v609 = vpop.permute.xlu0 %608
    %611 = vset.pattern.permute.xlu0 1
    %612 = vperm.xlu0 %611, %v483
    %v613 = vpop.permute.xlu0 %612
    %615 = vset.pattern.permute.xlu0 1
    %616 = vperm.xlu0 %615, %v498
    %v617 = vpop.permute.xlu0 %616
    %v619 = vmul.f32 %v571, %v589
    %v620 = vmul.f32 %v572, %v589
    %v621 = vmul.f32 %v573, %v593
    %v622 = vmul.f32 %v574, %v593
    %v623 = vmul.f32 %v575, %v597
    %v624 = vmul.f32 %v576, %v597
    %v625 = vmul.f32 %v577, %v601
    %v626 = vmul.f32 %v578, %v601
    %v627 = vmul.f32 %v579, %v605
    %v628 = vmul.f32 %v580, %v605
    %v629 = vmul.f32 %v581, %v609
    %v630 = vmul.f32 %v582, %v609
    %v631 = vmul.f32 %v583, %v613
    %v632 = vmul.f32 %v584, %v613
    %v633 = vmul.f32 %v585, %v617
    %v634 = vmul.f32 %v586, %v617
    %s635 = scalar_lea.vmem [#allocation5], 128
    %636 = vst [vmem:[%s635] sm:$0xff] %v619
    %637 = vst [vmem:[%s635 + $0x8] sm:$0xff] %v620
    %638 = vst [vmem:[%s635 + $0x10] sm:$0xff] %v621
    %639 = vst [vmem:[%s635 + $0x18] sm:$0xff] %v622
    %640 = vst [vmem:[%s635 + $0x20] sm:$0xff] %v623
    %641 = vst [vmem:[%s635 + $0x28] sm:$0xff] %v624
    %642 = vst [vmem:[%s635 + $0x30] sm:$0xff] %v625
    %643 = vst [vmem:[%s635 + $0x38] sm:$0xff] %v626
    %644 = vst [vmem:[%s635 + $0x40] sm:$0xff] %v627
    %645 = vst [vmem:[%s635 + $0x48] sm:$0xff] %v628
    %646 = vst [vmem:[%s635 + $0x50] sm:$0xff] %v629
    %647 = vst [vmem:[%s635 + $0x58] sm:$0xff] %v630
    %648 = vst [vmem:[%s635 + $0x60] sm:$0xff] %v631
    %649 = vst [vmem:[%s635 + $0x68] sm:$0xff] %v632
    %650 = vst [vmem:[%s635 + $0x70] sm:$0xff] %v633
    %651 = vst [vmem:[%s635 + $0x78] sm:$0xff] %v634
    // Predicated region
    $region18: #{tpu_custom_call.1} parent=1 // pred_check
      _
    $region19: #{tpu_custom_call.1} parent=1 // pred_check_branch
      %653 = sbr.rel (0) target = $region21
    $region20: #{tpu_custom_call.1} parent=1 // pred_region
      %655 = vsyncadd [#allocation4], 0
      %s656 = sshll.u32 [#allocation5], 4
      %s657 = int_to_ptr.vmem [resolvable:$true] %s656
      %s658 = sshll.u32 %s3, 4
      %s659 = int_to_ptr.hbm [resolvable:$true] %s658
      %664 = dma.vmem_to_hbm [thread:$0]  %s657, 4096, %s659, [#allocation4], 256, 256, 16
    $region21: #{tpu_custom_call.1} parent=1 // pred_fallthru
      _
    // Predicated region
    $region22: #{tpu_custom_call.1} parent=1 // pred_check
      _
    $region23: #{tpu_custom_call.1} parent=1 // pred_check_branch
      %666 = sbr.rel (0) target = $region25
    $region24: #{tpu_custom_call.1} parent=1 // pred_region
      %668 = dma.done [#allocation4], 4096
    $region25: #{tpu_custom_call.1} parent=1 // pred_fallthru
      _
    %669 = vsyncpa [#allocation3], 1
    %670 = vsyncpa [#allocation4], 1

</llo_original>
